<compile_context>
chip_gen: v5e
topology: v5e:2x2
jax: 0.10.0
libtpu: 0.0.40
codegen_flags: <defaults>
</compile_context>

<pallas_src>
import math

import jax
import jax.numpy as jnp
from jax.experimental import pallas as pl
from jax.experimental.pallas import tpu as pltpu


def _pick_tile_n(hw, c, vmem_budget_bytes=8 * 1024 * 1024):
    """Pick a lane-aligned pixel-tile size from a VMEM budget.

    Per grid step (double-buffered): logits (c*t*4) + labels (t*4) + loss (t*4)
    plus a tiny (1,128) partials row.
    """
    t = vmem_budget_bytes // (2 * 4 * (c + 2))
    t = min(t, 16384)                       # step overhead already negligible here
    t = min(t, pl.cdiv(hw, 128) * 128)      # don't exceed the (rounded-up) problem
    t = max((t // 128) * 128, 128)          # lane-aligned
    return int(t)


def _ce_losses_pallas(logits, labels, thresh, ignore_index=-100, tile_n=None):
    """Per-element cross entropy (reduction='none' semantics; ignored -> 0) plus
    fused reductions needed by OhemCELoss.

    logits: (B, C, *spatial), any float dtype (cast to f32 inside the kernel).
    labels: (B, *spatial), integer.
    Returns (loss_flat (B*prod(spatial),) f32,
             sum_loss, valid_count, count_above_thresh, sum_above_thresh).
    """
    B, C = int(logits.shape[0]), int(logits.shape[1])
    hw = int(math.prod(logits.shape[2:]))
    lg = logits.reshape(B, C, hw)                    # free reshape (NCHW is row-major)
    lb = labels.reshape(B, 1, hw).astype(jnp.int32)
    if tile_n is None:
        tile_n = _pick_tile_n(hw, C)
    n_tiles = pl.cdiv(hw, tile_n)
    thresh = float(thresh)

    def kernel(lg_ref, lb_ref, loss_ref, part_ref):
        j = pl.program_id(1)
        x = lg_ref[...].astype(jnp.float32)          # (C, tile_n), class on sublanes
        lab = lb_ref[...]                            # (1, tile_n) int32
        col = j * tile_n + jax.lax.broadcasted_iota(jnp.int32, (1, tile_n), 1)
        in_bounds = col < hw                         # mask the partial tail tile

        # stable log-sum-exp over the (small) class axis = sublane reduce
        m = jnp.max(x, axis=0, keepdims=True)
        lse = m + jnp.log(jnp.sum(jnp.exp(x - m), axis=0, keepdims=True))

        # target-class logit via one-hot compare + sublane reduce (VPU; C is far
        # too small for the MXU to be worthwhile)
        cls = jax.lax.broadcasted_iota(jnp.int32, (C, tile_n), 0)
        picked = jnp.sum(jnp.where(cls == lab, x, 0.0), axis=0, keepdims=True)

        valid = jnp.logical_and(lab != ignore_index, in_bounds)
        loss = jnp.where(valid, lse - picked, 0.0)   # ignored / OOB -> 0, like torch
        loss_ref[...] = loss                         # lane-dense (1, tile_n) store

        # fused per-tile reductions, packed into one lane-dense (1, 128) row:
        # lane0 = sum(loss), lane1 = #valid, lane2 = #(loss>thresh), lane3 = sum(loss>thresh)
        s = jnp.sum(loss, keepdims=True)
        c = jnp.sum(valid.astype(jnp.float32), keepdims=True)
        hard = loss > thresh
        c_thr = jnp.sum(hard.astype(jnp.float32), keepdims=True)
        s_thr = jnp.sum(jnp.where(hard, loss, 0.0), keepdims=True)
        lane = jax.lax.broadcasted_iota(jnp.int32, (1, 128), 1)
        part_ref[...] = (jnp.where(lane == 0, s, 0.0)
                         + jnp.where(lane == 1, c, 0.0)
                         + jnp.where(lane == 2, c_thr, 0.0)
                         + jnp.where(lane == 3, s_thr, 0.0))

    loss, part = pl.pallas_call(
        kernel,
        out_shape=(
            jax.ShapeDtypeStruct((B, 1, hw), jnp.float32),
            jax.ShapeDtypeStruct((B, 1, n_tiles * 128), jnp.float32),
        ),
        grid_spec=pltpu.PrefetchScalarGridSpec(
            num_scalar_prefetch=0,
            grid=(B, n_tiles),
            in_specs=[
                pl.BlockSpec((None, C, tile_n), lambda b, j: (b, 0, j)),
                pl.BlockSpec((None, 1, tile_n), lambda b, j: (b, 0, j)),
            ],
            out_specs=[
                pl.BlockSpec((None, 1, tile_n), lambda b, j: (b, 0, j)),
                pl.BlockSpec((None, 1, 128), lambda b, j: (b, 0, j)),
            ],
        ),
        compiler_params=pltpu.CompilerParams(
            dimension_semantics=("parallel", "parallel")),
    )(lg, lb)

    sums = jnp.sum(part.reshape(B * n_tiles, 128), axis=0)   # tiny XLA reduce
    return loss.reshape(-1), sums[0], sums[1], sums[2], sums[3]


class OhemCELoss:
    """JAX/Pallas port of safnet OhemCELoss (forward semantics)."""

    def __init__(self, thresh, n_min, weight=None, ignore_index=-100):
        self.thresh = float(-math.log(thresh))
        # The reference module hardcodes 8192 (ignoring the constructor arg).
        self.n_min = 8192
        # TODO(synk): per-class `weight` not implemented (module is used with weight=None).
        assert weight is None, "per-class weight not supported in this port"
        self.weight = weight
        self.ignore_index = ignore_index

    # ---- helpers -----------------------------------------------------------

    def _per_element(self, logits, labels):
        return _ce_losses_pallas(logits, labels, self.thresh, self.ignore_index)

    def _ohem(self, loss_flat, sum_thr, cnt_thr):
        n = loss_flat.shape[0]
        # clamp so small synthetic inputs are indexable; identical to the
        # reference whenever the flattened loss has > 8192 elements.
        k = min(self.n_min, n - 1)
        # top_k replaces the full descending sort: we only need the top-k values
        # and the (k+1)-th value for the branch condition.
        topk, _ = jax.lax.top_k(loss_flat, k + 1)
        cond = topk[k] > self.thresh
        mean_thr = sum_thr / jnp.maximum(cnt_thr, 1.0)   # fused in-kernel sums
        mean_top = jnp.mean(topk[:k])
        return jnp.where(cond, mean_thr, mean_top)

    # ---- forward -----------------------------------------------------------

    def __call__(self, preds, data_batch):
        loss_dict = {}

        logits = preds['seg_logit']                   # (B, C, H, W)
        labels = data_batch['seg_label']              # (B, H, W) int
        loss_el, s, c, c_thr, s_thr = self._per_element(logits, labels)
        loss_dict['normal_seg_loss_3d'] = s / c       # reduction='mean' w/ ignore
        loss_dict['seg_loss_3d'] = self._ohem(loss_el, s_thr, c_thr)

        if 'logit_2d' in preds:
            lg = jnp.transpose(preds['logit_2d'], (0, 1, 3, 2))  # permute(0,1,3,2)
            lb = data_batch['label_2d']               # (B, 1, H, W)
            b2, _, h2, w2 = lb.shape
            lb = lb.reshape(b2, h2, w2).astype(jnp.int32)
            loss_el2, _, _, c2_thr, s2_thr = self._per_element(lg, lb)
            loss_dict['seg_loss_2d'] = self._ohem(loss_el2, s2_thr, c2_thr)

        if 'logit_2d_chunks' in preds:
            loss_el3, _, _, c3_thr, s3_thr = self._per_element(
                preds['logit_2d_chunks'], data_batch['seg_label'])
            loss_dict['seg_loss_2d_3d'] = self._ohem(loss_el3, s3_thr, c3_thr)

        if 'logit_point_branch' in preds:
            _, s4, c4, _, _ = self._per_element(
                preds['logit_point_branch'], data_batch['seg_label'])
            loss_dict['seg_loss_point_branch'] = s4 / c4

        return loss_dict


if __name__ == "__main__":
    key = jax.random.PRNGKey(0)
    B, C, H, W = 2, 4, 16, 16
    k1, k2, k3, k4, k5, k6 = jax.random.split(key, 6)

    seg_logit = jax.random.normal(k1, (B, C, H, W), jnp.float32)
    seg_label = jax.random.randint(k2, (B, H, W), 0, C).astype(jnp.int32)
    ign = jax.random.uniform(k3, (B, H, W)) < 0.1          # sprinkle ignore_index
    seg_label = jnp.where(ign, -100, seg_label)

    logit_2d = jax.random.normal(k4, (B, C, H, W), jnp.float32)
    label_2d = jax.random.randint(k5, (B, 1, H, W), 0, C).astype(jnp.int32)
    logit_point = jax.random.normal(k6, (B, C, H, W), jnp.float32)

    preds = {
        'seg_logit': seg_logit,
        'logit_2d': logit_2d,
        'logit_2d_chunks': seg_logit * 0.5,
        'logit_point_branch': logit_point,
    }
    data_batch = {'seg_label': seg_label, 'label_2d': label_2d}

    criterion = OhemCELoss(thresh=0.7, n_min=8192)
    out = criterion(preds, data_batch)
    out = jax.tree_util.tree_map(jax.block_until_ready, out)
    assert all(bool(jnp.isfinite(v)) for v in out.values())
    print("KERNEL_OK")
</pallas_src>

<mosaic_0001>
module attributes {stable_mosaic.version = 11 : i64} {
  func.func @kernel(%arg0: i32, %arg1: i32, %arg2: memref<1x4x256xf32, #tpu.memory_space<vmem>>, %arg3: memref<1x1x256xi32, #tpu.memory_space<vmem>>, %arg4: memref<1x1x256xf32, #tpu.memory_space<vmem>>, %arg5: memref<1x1x128xf32, #tpu.memory_space<vmem>>) attributes {dimension_semantics = [#tpu.dimension_semantics<parallel>, #tpu.dimension_semantics<parallel>], iteration_bounds = array<i64: 2, 1>, scalar_prefetch = 0 : i64, scratch_operands = 0 : i64, tpu.core_type = #tpu.core_type<tc>, window_params = [{transform_indices = @transform_0, window_bounds = array<i64: 1, 4, 256>}, {transform_indices = @transform_1, window_bounds = array<i64: 1, 1, 256>}, {transform_indices = @transform_2, window_bounds = array<i64: 1, 1, 256>}, {transform_indices = @transform_3, window_bounds = array<i64: 1, 1, 128>}]} {
    %c0 = arith.constant 0 : index
    %c0_0 = arith.constant 0 : index
    %c0_1 = arith.constant 0 : index
    %0 = vector.load %arg2[%c0, %c0_0, %c0_1] : memref<1x4x256xf32, #tpu.memory_space<vmem>>, vector<1x4x256xf32>
    %1 = vector.shape_cast %0 : vector<1x4x256xf32> to vector<4x256xf32>
    %c0_2 = arith.constant 0 : index
    %c0_3 = arith.constant 0 : index
    %c0_4 = arith.constant 0 : index
    %2 = vector.load %arg3[%c0_2, %c0_3, %c0_4] : memref<1x1x256xi32, #tpu.memory_space<vmem>>, vector<1x1x256xi32>
    %3 = vector.shape_cast %2 : vector<1x1x256xi32> to vector<1x256xi32>
    %c256_i32 = arith.constant 256 : i32
    %4 = arith.muli %arg1, %c256_i32 : i32
    %5 = tpu.iota {dimensions = array<i32: 1>} : vector<1x256xi32>
    %6 = vector.broadcast %4 : i32 to vector<1x256xi32>
    %7 = arith.addi %6, %5 : vector<1x256xi32>
    %c256_i32_5 = arith.constant 256 : i32
    %8 = vector.broadcast %c256_i32_5 : i32 to vector<1x256xi32>
    %9 = arith.cmpi slt, %7, %8 : vector<1x256xi32>
    %cst = arith.constant dense<0xFF800000> : vector<256xf32>
    %10 = vector.multi_reduction <maximumf>, %1, %cst [0] : vector<4x256xf32> to vector<256xf32>
    %11 = vector.shape_cast %10 : vector<256xf32> to vector<1x256xf32>
    %12 = vector.broadcast %11 : vector<1x256xf32> to vector<4x256xf32>
    %13 = arith.subf %1, %12 : vector<4x256xf32>
    %14 = math.exp %13 : vector<4x256xf32>
    %cst_6 = arith.constant dense<0.000000e+00> : vector<256xf32>
    %15 = vector.multi_reduction <add>, %14, %cst_6 [0] : vector<4x256xf32> to vector<256xf32>
    %16 = vector.shape_cast %15 : vector<256xf32> to vector<1x256xf32>
    %17 = math.log %16 : vector<1x256xf32>
    %18 = arith.addf %11, %17 : vector<1x256xf32>
    %19 = tpu.iota {dimensions = array<i32: 0>} : vector<4x256xi32>
    %20 = vector.broadcast %3 : vector<1x256xi32> to vector<4x256xi32>
    %21 = arith.cmpi eq, %19, %20 : vector<4x256xi32>
    %cst_7 = arith.constant 0.000000e+00 : f32
    %22 = vector.broadcast %cst_7 : f32 to vector<4x256xf32>
    %23 = arith.select %21, %1, %22 : vector<4x256xi1>, vector<4x256xf32>
    %cst_8 = arith.constant dense<0.000000e+00> : vector<256xf32>
    %24 = vector.multi_reduction <add>, %23, %cst_8 [0] : vector<4x256xf32> to vector<256xf32>
    %25 = vector.shape_cast %24 : vector<256xf32> to vector<1x256xf32>
    %c-100_i32 = arith.constant -100 : i32
    %26 = vector.broadcast %c-100_i32 : i32 to vector<1x256xi32>
    %27 = arith.cmpi ne, %3, %26 : vector<1x256xi32>
    %28 = arith.andi %27, %9 : vector<1x256xi1>
    %29 = arith.subf %18, %25 : vector<1x256xf32>
    %cst_9 = arith.constant 0.000000e+00 : f32
    %30 = vector.broadcast %cst_9 : f32 to vector<1x256xf32>
    %31 = arith.select %28, %29, %30 : vector<1x256xi1>, vector<1x256xf32>
    %c0_10 = arith.constant 0 : index
    %c0_11 = arith.constant 0 : index
    %c0_12 = arith.constant 0 : index
    %32 = vector.load %arg4[%c0_10, %c0_11, %c0_12] : memref<1x1x256xf32, #tpu.memory_space<vmem>>, vector<1x1x256xf32>
    %33 = vector.shape_cast %32 : vector<1x1x256xf32> to vector<1x256xf32>
    %34 = vector.shape_cast %31 : vector<1x256xf32> to vector<1x1x256xf32>
    tpu.vector_store %arg4[%c0_10, %c0_11, %c0_12], %34 {strides = array<i32>} : memref<1x1x256xf32, #tpu.memory_space<vmem>>, vector<1x1x256xf32>,
    %35 = vector.shape_cast %31 : vector<1x256xf32> to vector<1x1x256xf32>
    %cst_13 = arith.constant dense<0.000000e+00> : vector<1xf32>
    %36 = vector.multi_reduction <add>, %35, %cst_13 [1, 2] : vector<1x1x256xf32> to vector<1xf32>
    %37 = vector.shape_cast %36 : vector<1xf32> to vector<1x1x1xf32>
    %38 = vector.extract %37[0, 0, 0] : f32 from vector<1x1x1xf32>
    %39 = vector.broadcast %38 : f32 to vector<1x1xf32>
    %40 = arith.extui %28 : vector<1x256xi1> to vector<1x256xi32>
    %41 = arith.sitofp %40 : vector<1x256xi32> to vector<1x256xf32>
    %42 = vector.shape_cast %41 : vector<1x256xf32> to vector<1x1x256xf32>
    %cst_14 = arith.constant dense<0.000000e+00> : vector<1xf32>
    %43 = vector.multi_reduction <add>, %42, %cst_14 [1, 2] : vector<1x1x256xf32> to vector<1xf32>
    %44 = vector.shape_cast %43 : vector<1xf32> to vector<1x1x1xf32>
    %45 = vector.extract %44[0, 0, 0] : f32 from vector<1x1x1xf32>
    %46 = vector.broadcast %45 : f32 to vector<1x1xf32>
    %cst_15 = arith.constant 0.356674939 : f32
    %47 = vector.broadcast %cst_15 : f32 to vector<1x256xf32>
    %48 = arith.cmpf ogt, %31, %47 : vector<1x256xf32>
    %49 = arith.extui %48 : vector<1x256xi1> to vector<1x256xi32>
    %50 = arith.sitofp %49 : vector<1x256xi32> to vector<1x256xf32>
    %51 = vector.shape_cast %50 : vector<1x256xf32> to vector<1x1x256xf32>
    %cst_16 = arith.constant dense<0.000000e+00> : vector<1xf32>
    %52 = vector.multi_reduction <add>, %51, %cst_16 [1, 2] : vector<1x1x256xf32> to vector<1xf32>
    %53 = vector.shape_cast %52 : vector<1xf32> to vector<1x1x1xf32>
    %54 = vector.extract %53[0, 0, 0] : f32 from vector<1x1x1xf32>
    %55 = vector.broadcast %54 : f32 to vector<1x1xf32>
    %cst_17 = arith.constant 0.000000e+00 : f32
    %56 = vector.broadcast %cst_17 : f32 to vector<1x256xf32>
    %57 = arith.select %48, %31, %56 : vector<1x256xi1>, vector<1x256xf32>
    %58 = vector.shape_cast %57 : vector<1x256xf32> to vector<1x1x256xf32>
    %cst_18 = arith.constant dense<0.000000e+00> : vector<1xf32>
    %59 = vector.multi_reduction <add>, %58, %cst_18 [1, 2] : vector<1x1x256xf32> to vector<1xf32>
    %60 = vector.shape_cast %59 : vector<1xf32> to vector<1x1x1xf32>
    %61 = vector.extract %60[0, 0, 0] : f32 from vector<1x1x1xf32>
    %62 = vector.broadcast %61 : f32 to vector<1x1xf32>
    %63 = tpu.iota {dimensions = array<i32: 1>} : vector<1x128xi32>
    %c0_i32 = arith.constant 0 : i32
    %64 = vector.broadcast %c0_i32 : i32 to vector<1x128xi32>
    %65 = arith.cmpi eq, %63, %64 : vector<1x128xi32>
    %cst_19 = arith.constant 0.000000e+00 : f32
    %66 = vector.shape_cast %39 : vector<1x1xf32> to vector<1x1xf32>
    %67 = vector.broadcast %66 : vector<1x1xf32> to vector<1x128xf32>
    %68 = vector.broadcast %cst_19 : f32 to vector<1x128xf32>
    %69 = arith.select %65, %67, %68 : vector<1x128xi1>, vector<1x128xf32>
    %c1_i32 = arith.constant 1 : i32
    %70 = vector.broadcast %c1_i32 : i32 to vector<1x128xi32>
    %71 = arith.cmpi eq, %63, %70 : vector<1x128xi32>
    %cst_20 = arith.constant 0.000000e+00 : f32
    %72 = vector.shape_cast %46 : vector<1x1xf32> to vector<1x1xf32>
    %73 = vector.broadcast %72 : vector<1x1xf32> to vector<1x128xf32>
    %74 = vector.broadcast %cst_20 : f32 to vector<1x128xf32>
    %75 = arith.select %71, %73, %74 : vector<1x128xi1>, vector<1x128xf32>
    %76 = arith.addf %69, %75 : vector<1x128xf32>
    %c2_i32 = arith.constant 2 : i32
    %77 = vector.broadcast %c2_i32 : i32 to vector<1x128xi32>
    %78 = arith.cmpi eq, %63, %77 : vector<1x128xi32>
    %cst_21 = arith.constant 0.000000e+00 : f32
    %79 = vector.shape_cast %55 : vector<1x1xf32> to vector<1x1xf32>
    %80 = vector.broadcast %79 : vector<1x1xf32> to vector<1x128xf32>
    %81 = vector.broadcast %cst_21 : f32 to vector<1x128xf32>
    %82 = arith.select %78, %80, %81 : vector<1x128xi1>, vector<1x128xf32>
    %83 = arith.addf %76, %82 : vector<1x128xf32>
    %c3_i32 = arith.constant 3 : i32
    %84 = vector.broadcast %c3_i32 : i32 to vector<1x128xi32>
    %85 = arith.cmpi eq, %63, %84 : vector<1x128xi32>
    %cst_22 = arith.constant 0.000000e+00 : f32
    %86 = vector.shape_cast %62 : vector<1x1xf32> to vector<1x1xf32>
    %87 = vector.broadcast %86 : vector<1x1xf32> to vector<1x128xf32>
    %88 = vector.broadcast %cst_22 : f32 to vector<1x128xf32>
    %89 = arith.select %85, %87, %88 : vector<1x128xi1>, vector<1x128xf32>
    %90 = arith.addf %83, %89 : vector<1x128xf32>
    %c0_23 = arith.constant 0 : index
    %c0_24 = arith.constant 0 : index
    %c0_25 = arith.constant 0 : index
    %91 = vector.load %arg5[%c0_23, %c0_24, %c0_25] : memref<1x1x128xf32, #tpu.memory_space<vmem>>, vector<1x1x128xf32>
    %92 = vector.shape_cast %91 : vector<1x1x128xf32> to vector<1x128xf32>
    %93 = vector.shape_cast %90 : vector<1x128xf32> to vector<1x1x128xf32>
    tpu.vector_store %arg5[%c0_23, %c0_24, %c0_25], %93 {strides = array<i32>} : memref<1x1x128xf32, #tpu.memory_space<vmem>>, vector<1x1x128xf32>,
    return
  }
  func.func @transform_0(%arg0: i32, %arg1: i32) -> (i32, i32, i32) {
    %c0_i32 = arith.constant 0 : i32
    %c0_i32_0 = arith.constant 0 : i32
    return %arg0, %c0_i32, %arg1 : i32, i32, i32
  }
  func.func @transform_1(%arg0: i32, %arg1: i32) -> (i32, i32, i32) {
    %c0_i32 = arith.constant 0 : i32
    %c0_i32_0 = arith.constant 0 : i32
    return %arg0, %c0_i32, %arg1 : i32, i32, i32
  }
  func.func @transform_2(%arg0: i32, %arg1: i32) -> (i32, i32, i32) {
    %c0_i32 = arith.constant 0 : i32
    %c0_i32_0 = arith.constant 0 : i32
    return %arg0, %c0_i32, %arg1 : i32, i32, i32
  }
  func.func @transform_3(%arg0: i32, %arg1: i32) -> (i32, i32, i32) {
    %c0_i32 = arith.constant 0 : i32
    %c0_i32_0 = arith.constant 0 : i32
    return %arg0, %c0_i32, %arg1 : i32, i32, i32
  }
}

</mosaic_0001>

<llo_original>
// kernel: tpu_custom_call.1
$region0: #{tpu_custom_call.1}
  #allocation0 [shape = 'u32[]', space=smem, size = 0x4, offset = 0x4, fixed_abs, tag = 'smem constant byte address 0x4 - core index']
  #allocation1 [shape = 'u32[72,128]{1,0:T(1,128)}', space=vmem, size = 0x9000, scoped, tag = 'internal scratch']
  %s0 = inlined_call_operand.hbm [shape: f32[2,4,256], index: 0, kind: input, shape index: {}]
  %s1 = inlined_call_operand.hbm [shape: s32[2,1,256], index: 1, kind: input, shape index: {}]
  %s2 = inlined_call_operand.hbm [shape: f32[2,1,256], index: 2, kind: output, shape index: {0}]
  %s3 = inlined_call_operand.hbm [shape: f32[2,1,128], index: 3, kind: output, shape index: {1}]
  %4 = xla_tuple %s2, %s3
  %s5 = sld [smem:[#allocation0]]
  $region57: #{tpu_custom_call.1} parent=0
    _
  %s7 = ssub.s32 1, %s5
  %s8 = scalar_select 0, %s7, %s5
  $region1: #{tpu_custom_call.1} parent=0
    #allocation2 [shape = 'u8[8192]{0}', space=vmem, size = 0x2000, scoped, tag = 'input window, operand 0']
    #allocation3 [shape = 's32[2]{0}', space=sflag, size = 0x8, scoped, tag = 'scoped memory for tpu_custom_call.1']
    #allocation4 [shape = 's32[2]{0}', space=sflag, size = 0x8, scoped, tag = 'scoped memory for tpu_custom_call.1']
    #allocation5 [shape = 'u8[2048]{0}', space=vmem, size = 0x800, scoped, tag = 'input window, operand 1']
    #allocation6 [shape = 's32[2]{0}', space=sflag, size = 0x8, scoped, tag = 'scoped memory for tpu_custom_call.1']
    #allocation7 [shape = 'u8[2048]{0}', space=vmem, size = 0x800, scoped, tag = 'output window, operand 0']
    #allocation8 [shape = 'u8[1024]{0}', space=vmem, size = 0x400, scoped, tag = 'output window, operand 1']
    #allocation9 [shape = 's32[2]{0}', space=sflag, size = 0x8, scoped, tag = 'scoped memory for tpu_custom_call.1']
    %9 = vsyncpa [#allocation3], 0
    %s10 = scalar_lea.sflag [#allocation3], 1
    %11 = vsyncpa %s10, 0
    %12 = vsyncpa [#allocation6], 0
    %s13 = scalar_lea.sflag [#allocation6], 1
    %14 = vsyncpa %s13, 0
    %15 = vsyncpa [#allocation4], 0
    %s16 = scalar_lea.sflag [#allocation4], 1
    %17 = vsyncpa %s16, 0
    %18 = vsyncpa [#allocation9], 0
    %s19 = scalar_lea.sflag [#allocation9], 1
    %20 = vsyncpa %s19, 0
    loop: start=0, step=1, limit=4
    $region2: #{tpu_custom_call.1} parent=1 // loop_pre_header
      _
    $region3: #{tpu_custom_call.1} parent=1 // loop_header
      %s22 = sphi 0, %s26
      %p23 = scmp.ge.s32.totalorder %s22, 4
      %s29 = sphi 0, %s41
      %s30 = sphi 0, %s37
      %s31 = sphi 0, %s29
      %s32 = sphi 0, %s30
      %s33 = sphi 0, %s31
      %s34 = sphi 0, %s32
      %s46 = sphi 0, %s48
      %s49 = sphi 0, %s46
      %s50 = sphi 0, %s49
      %s66 = sphi 0, %s50
      %s74 = sphi 0, %s76
      %s77 = sphi 0, %s74
      %s78 = sphi 0, %s77
      %s94 = sphi 0, %s78
      %s102 = sphi 0, %s104
      %s105 = sphi 0, %s102
      %s106 = sphi 0, %s105
      %s122 = sphi 0, %s106
      %s130 = sphi 0, %s132
      %s133 = sphi 0, %s130
      %s134 = sphi 0, %s133
      %s150 = sphi 0, %s134
    $region4: #{tpu_custom_call.1} parent=1 // loop_header_branch
      %25 = sbr.rel (%p23) target = $region8
    $region5: #{tpu_custom_call.1} parent=1 // loop_body
      %s27 = ssub.s32 %s22, 1
      %s28 = ssub.s32 %s22, 2
      %s35 = sadd.s32 1, %s30
      %p36 = scmp.ge.s32.totalorder %s35, 1
      %s37 = scalar_select %p36, 0, %s35
      %s38 = sadd.s32 1, %s29
      %s39 = scalar_select %p36, %s38, %s29
      %p40 = scmp.ge.s32.totalorder %s39, 2
      %s41 = scalar_select %p40, 0, %s39
      %s42 = ssub.s32 %s29, %s41
      %s43 = ssub.s32 %s30, %s37
      %s44 = sor.u32 %s42, %s43
      %p45 = scmp.eq.s32.totalorder %s44, 0
      %s47 = sadd.s32 %s46, 1
      %s48 = scalar_select %p45, %s46, %s47
      %p51 = pneg %p45
      %p52 = scmp.eq.s32.totalorder %s22, 1
      %p53 = por %p51, %p52
      %p54 = scmp.ne.s32.totalorder %s46, %s49
      %p55 = scmp.eq.s32.totalorder %s22, 0
      %p56 = por %p54, %p55
      %p57 = scmp.ne.s32.totalorder %s46, %s49
      %p58 = scmp.eq.s32.totalorder %s27, 1
      %p59 = por %p57, %p58
      %p60 = scmp.ne.s32.totalorder %s49, %s50
      %p61 = scmp.eq.s32.totalorder %s27, 0
      %p62 = por %p60, %p61
      %p63 = scmp.ne.s32.totalorder %s49, %s50
      %p64 = scmp.eq.s32.totalorder %s28, 1
      %p65 = por %p63, %p64
      %p67 = scmp.ne.s32.totalorder %s50, %s66
      %p68 = scmp.eq.s32.totalorder %s28, 0
      %p69 = por %p67, %p68
      %s70 = ssub.s32 %s29, %s41
      %s71 = ssub.s32 %s30, %s37
      %s72 = sor.u32 %s70, %s71
      %p73 = scmp.eq.s32.totalorder %s72, 0
      %s75 = sadd.s32 %s74, 1
      %s76 = scalar_select %p73, %s74, %s75
      %p79 = pneg %p73
      %p80 = scmp.eq.s32.totalorder %s22, 1
      %p81 = por %p79, %p80
      %p82 = scmp.ne.s32.totalorder %s74, %s77
      %p83 = scmp.eq.s32.totalorder %s22, 0
      %p84 = por %p82, %p83
      %p85 = scmp.ne.s32.totalorder %s74, %s77
      %p86 = scmp.eq.s32.totalorder %s27, 1
      %p87 = por %p85, %p86
      %p88 = scmp.ne.s32.totalorder %s77, %s78
      %p89 = scmp.eq.s32.totalorder %s27, 0
      %p90 = por %p88, %p89
      %p91 = scmp.ne.s32.totalorder %s77, %s78
      %p92 = scmp.eq.s32.totalorder %s28, 1
      %p93 = por %p91, %p92
      %p95 = scmp.ne.s32.totalorder %s78, %s94
      %p96 = scmp.eq.s32.totalorder %s28, 0
      %p97 = por %p95, %p96
      %s98 = ssub.s32 %s29, %s41
      %s99 = ssub.s32 %s30, %s37
      %s100 = sor.u32 %s98, %s99
      %p101 = scmp.eq.s32.totalorder %s100, 0
      %s103 = sadd.s32 %s102, 1
      %s104 = scalar_select %p101, %s102, %s103
      %p107 = pneg %p101
      %p108 = scmp.eq.s32.totalorder %s22, 1
      %p109 = por %p107, %p108
      %p110 = scmp.ne.s32.totalorder %s102, %s105
      %p111 = scmp.eq.s32.totalorder %s22, 0
      %p112 = por %p110, %p111
      %p113 = scmp.ne.s32.totalorder %s102, %s105
      %p114 = scmp.eq.s32.totalorder %s27, 1
      %p115 = por %p113, %p114
      %p116 = scmp.ne.s32.totalorder %s105, %s106
      %p117 = scmp.eq.s32.totalorder %s27, 0
      %p118 = por %p116, %p117
      %p119 = scmp.ne.s32.totalorder %s105, %s106
      %p120 = scmp.eq.s32.totalorder %s28, 1
      %p121 = por %p119, %p120
      %p123 = scmp.ne.s32.totalorder %s106, %s122
      %p124 = scmp.eq.s32.totalorder %s28, 0
      %p125 = por %p123, %p124
      %s126 = ssub.s32 %s29, %s41
      %s127 = ssub.s32 %s30, %s37
      %s128 = sor.u32 %s126, %s127
      %p129 = scmp.eq.s32.totalorder %s128, 0
      %s131 = sadd.s32 %s130, 1
      %s132 = scalar_select %p129, %s130, %s131
      %p135 = pneg %p129
      %p136 = scmp.eq.s32.totalorder %s22, 1
      %p137 = por %p135, %p136
      %p138 = scmp.ne.s32.totalorder %s130, %s133
      %p139 = scmp.eq.s32.totalorder %s22, 0
      %p140 = por %p138, %p139
      %p141 = scmp.ne.s32.totalorder %s130, %s133
      %p142 = scmp.eq.s32.totalorder %s27, 1
      %p143 = por %p141, %p142
      %p144 = scmp.ne.s32.totalorder %s133, %s134
      %p145 = scmp.eq.s32.totalorder %s27, 0
      %p146 = por %p144, %p145
      %p147 = scmp.ne.s32.totalorder %s133, %s134
      %p148 = scmp.eq.s32.totalorder %s28, 1
      %p149 = por %p147, %p148
      %p151 = scmp.ne.s32.totalorder %s134, %s150
      %p152 = scmp.eq.s32.totalorder %s28, 0
      %p153 = por %p151, %p152
      %p154 = scmp.le.s32.totalorder 1, %s22
      %p155 = scmp.lt.s32.totalorder %s22, 3
      %p156 = pnand %p154, %p155
      %p157 = pneg %p156
      // Predicated region
      $region9: #{tpu_custom_call.1} parent=5 // pred_check
        _
      $region10: #{tpu_custom_call.1} parent=5 // pred_check_branch
        %159 = sbr.rel (%p156) target = $region12
      $region11: #{tpu_custom_call.1} parent=5 // pred_region
        %s160 = ssub.s32 %s22, 1
      $region12: #{tpu_custom_call.1} parent=5 // pred_fallthru
        _
      %p161 = scmp.lt.s32.totalorder %s22, 2
      // Predicated region
      $region13: #{tpu_custom_call.1} parent=5 // pred_check
        %p162 = pneg %p161
      $region14: #{tpu_custom_call.1} parent=5 // pred_check_branch
        %164 = sbr.rel (%p162) target = $region16
      $region15: #{tpu_custom_call.1} parent=5 // pred_region
        // Predicated region
        $region17: #{tpu_custom_call.1} parent=15 // pred_check
          %p165 = pneg %p56
        $region18: #{tpu_custom_call.1} parent=15 // pred_check_branch
          %167 = sbr.rel (%p165) target = $region20
        $region19: #{tpu_custom_call.1} parent=15 // pred_region
          %s168 = sand.u32 %s46, 1
          %s169 = scalar_lea.sflag [#allocation3], %s168
          %s170 = sand.u32 %s46, 1
          %s171 = smul.addr %s170, 8
          %s172 = scalar_lea.vmem [#allocation2], %s171
          %s173 = smul.u32 2, %s30
          %175 = vsyncadd %s169, 0
          %s176 = smul.addr %s29, 2
          %s177 = sadd.s32 %s173, %s176
          %s178 = smul.addr %s177, 4
          %s179 = scalar_lea.hbm %s0, %s178
          %s181 = sshll.u32 %s179, 4
          %s182 = int_to_ptr.hbm [resolvable:$true] %s181
          %s183 = sshll.u32 %s172, 4
          %s184 = int_to_ptr.vmem [resolvable:$true] %s183
          %186 = dma.hbm_to_vmem [thread:$0]  %s182, 128, %s184, %s169
        $region20: #{tpu_custom_call.1} parent=15 // pred_fallthru
          _
        // Predicated region
        $region21: #{tpu_custom_call.1} parent=15 // pred_check
          %p187 = pneg %p84
        $region22: #{tpu_custom_call.1} parent=15 // pred_check_branch
          %189 = sbr.rel (%p187) target = $region24
        $region23: #{tpu_custom_call.1} parent=15 // pred_region
          %s190 = sand.u32 %s74, 1
          %s191 = scalar_lea.sflag [#allocation6], %s190
          %s192 = sand.u32 %s74, 1
          %s193 = smul.addr %s192, 2
          %s194 = scalar_lea.vmem [#allocation5], %s193
          %s195 = smul.u32 2, %s30
          %197 = vsyncadd %s191, 0
          %s198 = smul.addr %s29, 2
          %s199 = sadd.s32 %s195, %s198
          %s200 = scalar_lea.hbm %s1, %s199
          %s202 = sshll.u32 %s200, 4
          %s203 = int_to_ptr.hbm [resolvable:$true] %s202
          %s204 = sshll.u32 %s194, 4
          %s205 = int_to_ptr.vmem [resolvable:$true] %s204
          %207 = dma.hbm_to_vmem [thread:$0]  %s203, 32, %s205, %s191
        $region24: #{tpu_custom_call.1} parent=15 // pred_fallthru
          _
      $region16: #{tpu_custom_call.1} parent=5 // pred_fallthru
        _
      %p208 = scmp.le.s32.totalorder 1, %s22
      %p209 = scmp.lt.s32.totalorder %s22, 3
      %p210 = pnand %p208, %p209
      %p211 = pneg %p210
      // Predicated region
      $region25: #{tpu_custom_call.1} parent=5 // pred_check
        _
      $region26: #{tpu_custom_call.1} parent=5 // pred_check_branch
        %213 = sbr.rel (%p210) target = $region28
      $region27: #{tpu_custom_call.1} parent=5 // pred_region
        %s214 = ssub.s32 %s22, 1
        %s215 = sand.u32 %s49, 1
        %s216 = scalar_lea.sflag [#allocation3], %s215
        %s217 = sand.u32 %s49, 1
        %s218 = smul.addr %s217, 8
        %s219 = scalar_lea.vmem [#allocation2], %s218
        // Predicated region
        $region29: #{tpu_custom_call.1} parent=27 // pred_check
          %p220 = pneg %p62
        $region30: #{tpu_custom_call.1} parent=27 // pred_check_branch
          %222 = sbr.rel (%p220) target = $region32
        $region31: #{tpu_custom_call.1} parent=27 // pred_region
          %224 = dma.done %s216, 128
        $region32: #{tpu_custom_call.1} parent=27 // pred_fallthru
          _
        %s225 = sand.u32 %s77, 1
        %s226 = scalar_lea.sflag [#allocation6], %s225
        %s227 = sand.u32 %s77, 1
        %s228 = smul.addr %s227, 2
        %s229 = scalar_lea.vmem [#allocation5], %s228
        // Predicated region
        $region33: #{tpu_custom_call.1} parent=27 // pred_check
          %p230 = pneg %p90
        $region34: #{tpu_custom_call.1} parent=27 // pred_check_branch
          %232 = sbr.rel (%p230) target = $region36
        $region35: #{tpu_custom_call.1} parent=27 // pred_region
          %234 = dma.done %s226, 32
        $region36: #{tpu_custom_call.1} parent=27 // pred_fallthru
          _
        %s235 = sand.u32 %s49, 1
        %s236 = scalar_lea.sflag [#allocation3], %s235
        %s237 = sand.u32 %s49, 1
        %s238 = smul.addr %s237, 8
        %s239 = scalar_lea.vmem [#allocation2], %s238
        %p240 = pneg %p62
        %p241 = pneg %p59
        %s242 = sand.u32 %s77, 1
        %s243 = scalar_lea.sflag [#allocation6], %s242
        %s244 = sand.u32 %s77, 1
        %s245 = smul.addr %s244, 2
        %s246 = scalar_lea.vmem [#allocation5], %s245
        %p247 = pneg %p90
        %p248 = pneg %p87
        %p249 = pneg %p118
        %p250 = pneg %p115
        %s251 = sand.u32 %s105, 1
        %s252 = scalar_lea.sflag [#allocation4], %s251
        %s253 = sand.u32 %s105, 1
        %s254 = smul.addr %s253, 2
        %s255 = scalar_lea.vmem [#allocation7], %s254
        %p256 = pneg %p146
        %p257 = pneg %p143
        %s258 = sand.u32 %s133, 1
        %s259 = scalar_lea.sflag [#allocation9], %s258
        %s260 = sand.u32 %s133, 1
        %s261 = scalar_lea.vmem [#allocation8], %s260
        %s262 = smul.u32 2, %s32
        %s263 = smul.u32 2, %s32
        %s264 = smul.u32 2, %s32
        %v265 = vld [vmem:[%s219] sm:$0xff]
        %v266 = vld [vmem:[%s229] sm:$0x3]
        %s267 = smul.u32 %s32, 256
        %v268 = vlaneseq
        %v269 = vand.u32 %v268, 127
        %v270 = vadd.s32 %v269, 128
        %v271 = vstv %s267
        %v272 = vadd.s32 %v271, %v269
        %v273 = vadd.s32 %v271, %v270
        %vm274 = vcmp.lt.s32.totalorder %v272, 256
        %vm275 = vcmp.lt.s32.totalorder %v273, 256
        %277 = vst [vmem:[#allocation1] ss:$2 sm:$0xff] %v265
        %v278 = vld.sshfl [vmem:[#allocation1] sm:$0xff pattern:$0x75316420]
        %v279 = vld.sshfl [vmem:[#allocation1 + $0x8] sm:$0xff pattern:$0x75316420]
        %vm282 = vcmask 1043456
        %v283 = vsel %vm282, %v278, -inf
        %v284 = vrot.slane %v283, 4
        %v285 = vmax.f32 %v283, %v284
        %v286 = vrot.slane %v285, 2
        %v287 = vmax.f32 %v285, %v286
        %v288 = vrot.slane %v287, 1
        %v289 = vmax.f32 %v287, %v288
        %v290 = vsel %vm282, %v279, -inf
        %v291 = vrot.slane %v290, 4
        %v292 = vmax.f32 %v290, %v291
        %v293 = vrot.slane %v292, 2
        %v294 = vmax.f32 %v292, %v293
        %v295 = vrot.slane %v294, 1
        %v296 = vmax.f32 %v294, %v295
        %v299 = vrot.slane %v296, 4
        %v300 = vsel %vm282, %v289, %v299
        %v302 = vsub.f32 %v265, %v300
        %v303 = vmul.f32 %v302, 1.442695
        %v304 = vpow.pop %v303
        %306 = vst [vmem:[#allocation1] ss:$2 sm:$0xff] %v304
        %v307 = vld.sshfl [vmem:[#allocation1] sm:$0xff pattern:$0x75316420]
        %v308 = vld.sshfl [vmem:[#allocation1 + $0x8] sm:$0xff pattern:$0x75316420]
        %v311 = vsel %vm282, %v307, 0.0
        %v312 = vrot.slane %v311, 4
        %v313 = vadd.f32 %v311, %v312
        %v314 = vrot.slane %v313, 2
        %v315 = vadd.f32 %v313, %v314
        %v316 = vrot.slane %v315, 1
        %v317 = vadd.f32 %v315, %v316
        %v318 = vsel %vm282, %v308, 0.0
        %v319 = vrot.slane %v318, 4
        %v320 = vadd.f32 %v318, %v319
        %v321 = vrot.slane %v320, 2
        %v322 = vadd.f32 %v320, %v321
        %v323 = vrot.slane %v322, 1
        %v324 = vadd.f32 %v322, %v323
        %v325 = vlog2.pop %v317
        %v326 = vmul.f32 %v325, 0.6931472
        %v327 = vlog2.pop %v324
        %v328 = vmul.f32 %v327, 0.6931472
        %v329 = vadd.f32 %v289, %v326
        %v330 = vadd.f32 %v296, %v328
        %v331 = vlaneseq
        %v332 = vshrl.u32 %v331, 7
        %v333 = vperm.slane %v266, 0
        %v334 = vperm.slane %v266, 1
        %vm335 = vcmp.eq.s32.totalorder %v332, %v333
        %vm336 = vcmp.eq.s32.totalorder %v332, %v334
        %337 = vst [vmem:[#allocation1] ss:$2 sm:$0xff] %v265
        %v338 = vld.sshfl [vmem:[#allocation1] sm:$0xff pattern:$0x75316420]
        %v339 = vld.sshfl [vmem:[#allocation1 + $0x8] sm:$0xff pattern:$0x75316420]
        %v342 = vsel %vm335, %v338, 0.0
        %v343 = vsel %vm336, %v339, 0.0
        %v344 = vsel %vm282, %v342, 0.0
        %v345 = vrot.slane %v344, 4
        %v346 = vadd.f32 %v344, %v345
        %v347 = vrot.slane %v346, 2
        %v348 = vadd.f32 %v346, %v347
        %v349 = vrot.slane %v348, 1
        %v350 = vadd.f32 %v348, %v349
        %v351 = vsel %vm282, %v343, 0.0
        %v352 = vrot.slane %v351, 4
        %v353 = vadd.f32 %v351, %v352
        %v354 = vrot.slane %v353, 2
        %v355 = vadd.f32 %v353, %v354
        %v356 = vrot.slane %v355, 1
        %v357 = vadd.f32 %v355, %v356
        %vm358 = vcmp.ne.s32.totalorder %v266, 4294967196
        %v359 = vsel %vm274, 1, 0
        %v360 = vsel %vm275, 1, 0
        %v361 = vrot.slane %v360, 7
        %vm362 = vcmask 1040384
        %v363 = vsel %vm362, %v359, %v361
        %vm364 = vcmp.ne.s32.totalorder %v363, 0
        %vm365 = vmand %vm358, %vm364
        %v366 = vsub.f32 %v329, %v350
        %v367 = vsub.f32 %v330, %v357
        %v370 = vrot.slane %v367, 7
        %v371 = vsel %vm362, %v366, %v370
        %v373 = vsel %vm365, %v371, 0.0
        %v374 = vlaneseq
        %vm375 = vcmp.ge.s32.totalorder %v374, 0
        %vm376 = vcmp.lt.s32.totalorder %v374, 256
        %vm377 = vmand %vm375, %vm376
        %378 = vst.msk [vmem:[%s255] sm:$0x3] %vm377, %v373
        %v380 = vperm.slane %v373, 0
        %v381 = vperm.slane %v373, 1
        %v384 = vsel %vm362, %v380, 0.0
        %v385 = vsel %vm362, %v381, 0.0
        %v386 = vadd.f32 %v384, %v385
        %387 = vadd.xlane.f32.xlu0 %v386
        %v388 = vpop.xlane.xlu0 %387
        %v389 = vrot.slane %v388, 4
        %v390 = vadd.f32 %v388, %v389
        %v391 = vrot.slane %v390, 2
        %v392 = vadd.f32 %v390, %v391
        %v393 = vrot.slane %v392, 1
        %v394 = vadd.f32 %v392, %v393
        %s395 = vtos %v394
        %v396 = vsel %vm365, 1, 0
        %v397 = vcvt.s32.f32 %v396
        %v399 = vperm.slane %v397, 0
        %v400 = vperm.slane %v397, 1
        %v403 = vsel %vm362, %v399, 0.0
        %v404 = vsel %vm362, %v400, 0.0
        %v405 = vadd.f32 %v403, %v404
        %406 = vadd.xlane.f32.xlu0 %v405
        %v407 = vpop.xlane.xlu0 %406
        %v408 = vrot.slane %v407, 4
        %v409 = vadd.f32 %v407, %v408
        %v410 = vrot.slane %v409, 2
        %v411 = vadd.f32 %v409, %v410
        %v412 = vrot.slane %v411, 1
        %v413 = vadd.f32 %v411, %v412
        %s414 = vtos %v413
        %vm415 = vcmp.gt.f32.partialorder %v373, 0.35667494
        %v416 = vsel %vm415, 1, 0
        %v417 = vcvt.s32.f32 %v416
        %v419 = vperm.slane %v417, 0
        %v420 = vperm.slane %v417, 1
        %v423 = vsel %vm362, %v419, 0.0
        %v424 = vsel %vm362, %v420, 0.0
        %v425 = vadd.f32 %v423, %v424
        %426 = vadd.xlane.f32.xlu0 %v425
        %v427 = vpop.xlane.xlu0 %426
        %v428 = vrot.slane %v427, 4
        %v429 = vadd.f32 %v427, %v428
        %v430 = vrot.slane %v429, 2
        %v431 = vadd.f32 %v429, %v430
        %v432 = vrot.slane %v431, 1
        %v433 = vadd.f32 %v431, %v432
        %s434 = vtos %v433
        %v435 = vsel %vm415, %v373, 0.0
        %v437 = vperm.slane %v435, 0
        %v438 = vperm.slane %v435, 1
        %v441 = vsel %vm362, %v437, 0.0
        %v442 = vsel %vm362, %v438, 0.0
        %v443 = vadd.f32 %v441, %v442
        %444 = vadd.xlane.f32.xlu0 %v443
        %v445 = vpop.xlane.xlu0 %444
        %v446 = vrot.slane %v445, 4
        %v447 = vadd.f32 %v445, %v446
        %v448 = vrot.slane %v447, 2
        %v449 = vadd.f32 %v447, %v448
        %v450 = vrot.slane %v449, 1
        %v451 = vadd.f32 %v449, %v450
        %s452 = vtos %v451
        %vm453 = vcmp.eq.s32.totalorder %v269, 0
        %v454 = vstv %s395
        %v455 = vsel %vm453, %v454, 0.0
        %vm456 = vcmp.eq.s32.totalorder %v269, 1
        %v457 = vstv %s414
        %v458 = vsel %vm456, %v457, 0.0
        %v459 = vadd.f32 %v455, %v458
        %vm460 = vcmp.eq.s32.totalorder %v269, 2
        %v461 = vstv %s434
        %v462 = vsel %vm460, %v461, 0.0
        %v463 = vadd.f32 %v459, %v462
        %vm464 = vcmp.eq.s32.totalorder %v269, 3
        %v465 = vstv %s452
        %v466 = vsel %vm464, %v465, 0.0
        %v467 = vadd.f32 %v463, %v466
        %468 = vst [vmem:[%s261] sm:$0x1] %v467
        %s469 = sand.u32 %s105, 1
        %s470 = scalar_lea.sflag [#allocation4], %s469
        %s471 = sand.u32 %s105, 1
        %s472 = smul.addr %s471, 2
        %s473 = scalar_lea.vmem [#allocation7], %s472
        %s474 = sand.u32 %s133, 1
        %s475 = scalar_lea.sflag [#allocation9], %s474
        %s476 = sand.u32 %s133, 1
        %s477 = scalar_lea.vmem [#allocation8], %s476
        // Predicated region
        $region37: #{tpu_custom_call.1} parent=27 // pred_check
          %p478 = pneg %p115
        $region38: #{tpu_custom_call.1} parent=27 // pred_check_branch
          %480 = sbr.rel (%p478) target = $region40
        $region39: #{tpu_custom_call.1} parent=27 // pred_region
          %s481 = smul.u32 2, %s32
          %483 = vsyncadd %s470, 0
          %s484 = smul.addr %s31, 2
          %s485 = sadd.s32 %s481, %s484
          %s486 = scalar_lea.hbm %s2, %s485
          %s488 = sshll.u32 %s473, 4
          %s489 = int_to_ptr.vmem [resolvable:$true] %s488
          %s490 = sshll.u32 %s486, 4
          %s491 = int_to_ptr.hbm [resolvable:$true] %s490
          %493 = dma.vmem_to_hbm [thread:$0]  %s489, 32, %s491, %s470
        $region40: #{tpu_custom_call.1} parent=27 // pred_fallthru
          _
        // Predicated region
        $region41: #{tpu_custom_call.1} parent=27 // pred_check
          %p494 = pneg %p143
        $region42: #{tpu_custom_call.1} parent=27 // pred_check_branch
          %496 = sbr.rel (%p494) target = $region44
        $region43: #{tpu_custom_call.1} parent=27 // pred_region
          %498 = vsyncadd %s475, 0
          %s499 = sadd.s32 %s32, %s31
          %s500 = scalar_lea.hbm %s3, %s499
          %s502 = sshll.u32 %s477, 4
          %s503 = int_to_ptr.vmem [resolvable:$true] %s502
          %s504 = sshll.u32 %s500, 4
          %s505 = int_to_ptr.hbm [resolvable:$true] %s504
          %507 = dma.vmem_to_hbm [thread:$0]  %s503, 16, %s505, %s475
        $region44: #{tpu_custom_call.1} parent=27 // pred_fallthru
          _
      $region28: #{tpu_custom_call.1} parent=5 // pred_fallthru
        _
      %p508 = scmp.le.s32.totalorder 2, %s22
      // Predicated region
      $region45: #{tpu_custom_call.1} parent=5 // pred_check
        %p509 = pneg %p508
      $region46: #{tpu_custom_call.1} parent=5 // pred_check_branch
        %511 = sbr.rel (%p509) target = $region48
      $region47: #{tpu_custom_call.1} parent=5 // pred_region
        %s512 = ssub.s32 %s22, 2
        // Predicated region
        $region49: #{tpu_custom_call.1} parent=47 // pred_check
          %p513 = pneg %p121
        $region50: #{tpu_custom_call.1} parent=47 // pred_check_branch
          %515 = sbr.rel (%p513) target = $region52
        $region51: #{tpu_custom_call.1} parent=47 // pred_region
          %s516 = sand.u32 %s106, 1
          %s517 = scalar_lea.sflag [#allocation4], %s516
          %s518 = sand.u32 %s106, 1
          %s519 = smul.addr %s518, 2
          %s520 = scalar_lea.vmem [#allocation7], %s519
          %522 = dma.done %s517, 32
        $region52: #{tpu_custom_call.1} parent=47 // pred_fallthru
          _
        // Predicated region
        $region53: #{tpu_custom_call.1} parent=47 // pred_check
          %p523 = pneg %p149
        $region54: #{tpu_custom_call.1} parent=47 // pred_check_branch
          %525 = sbr.rel (%p523) target = $region56
        $region55: #{tpu_custom_call.1} parent=47 // pred_region
          %s526 = sand.u32 %s134, 1
          %s527 = scalar_lea.sflag [#allocation9], %s526
          %s528 = sand.u32 %s134, 1
          %s529 = scalar_lea.vmem [#allocation8], %s528
          %531 = dma.done %s527, 16
        $region56: #{tpu_custom_call.1} parent=47 // pred_fallthru
          _
      $region48: #{tpu_custom_call.1} parent=5 // pred_fallthru
        _
    $region6: #{tpu_custom_call.1} parent=1 // loop_footer
      %s26 = sadd.s32 1, %s22
    $region7: #{tpu_custom_call.1} parent=1 // loop_footer_branch
      %21 = sbr.rel target = $region3
    $region8: #{tpu_custom_call.1} parent=1 // loop_exit
      _
    %532 = vsyncpa [#allocation3], 1
    %s533 = scalar_lea.sflag [#allocation3], 1
    %534 = vsyncpa %s533, 1
    %535 = vsyncpa [#allocation6], 1
    %s536 = scalar_lea.sflag [#allocation6], 1
    %537 = vsyncpa %s536, 1
    %538 = vsyncpa [#allocation4], 1
    %s539 = scalar_lea.sflag [#allocation4], 1
    %540 = vsyncpa %s539, 1
    %541 = vsyncpa [#allocation9], 1
    %s542 = scalar_lea.sflag [#allocation9], 1
    %543 = vsyncpa %s542, 1

</llo_original>
